<compile_context>
chip_gen: v6e
topology: v6e:2x2x1
jax: 0.10.0
libtpu: 0.0.40
codegen_flags: <defaults>
</compile_context>

<pallas_src>
import jax
import jax.numpy as jnp
from jax.experimental import pallas as pl
from jax.experimental.pallas import tpu as pltpu


# ---------------------------------------------------------------------------
# model dimensions (small, consistent with the forward semantics)
# ---------------------------------------------------------------------------
B = 2            # batch
C = 4            # input channels
H = W = 16       # spatial
PATCH = 4        # patch size
N_PATCH = (H // PATCH) * (W // PATCH)          # 16 tokens / image
P_DIM = PATCH * PATCH * C                      # 64  (per-patch pixel dim)
EMBED_DIM = 64
ENC_HID = 128
LATENT = 16
DEC_HID = 128
OUT_DIM = PATCH * PATCH * C                    # 64  (decoder.output_dim)

# packed output layout (lane-dense width 128)
PACK_W = 128
REC_OFF = 0
MEAN_OFF = OUT_DIM                             # 64
LOGVAR_OFF = MEAN_OFF + LATENT                 # 80
Z_OFF = LOGVAR_OFF + LATENT                    # 96
USED_W = Z_OFF + LATENT                        # 112

# weight-slab row offsets (bf16; all offsets multiples of 16 for sublane packing)
W_LANES = 128
WE_R0, WE_R1 = 0, P_DIM                        # [  0, 64)   we  : (64, 64)
W1_R0, W1_R1 = WE_R1, WE_R1 + EMBED_DIM        # [ 64,128)   w1  : (64,128)
W2M_R0, W2M_R1 = W1_R1, W1_R1 + ENC_HID        # [128,256)   w2m : (128,16)
W2V_R0, W2V_R1 = W2M_R1, W2M_R1 + ENC_HID      # [256,384)   w2v : (128,16)
WD1_R0, WD1_R1 = W2V_R1, W2V_R1 + LATENT       # [384,400)   wd1 : (16,128)
WD2_R0, WD2_R1 = WD1_R1, WD1_R1 + DEC_HID      # [400,528)   wd2 : (128,64)
W_ROWS = WD2_R1                                # 528
B_ROWS = 8                                     # bias slab rows (6 used + 2 pad)


def _gelu(x):
    # tanh-approximate GELU (EUP-friendly); computed in f32.
    return 0.5 * x * (1.0 + jnp.tanh(0.7978845608028654 * (x + 0.044715 * x * x * x)))


# ---------------------------------------------------------------------------
# fused VAE kernel: embed -> encoder MLP -> moments -> sample -> decoder MLP
# ---------------------------------------------------------------------------
def vae_kernel(patch_ref, eps_ref, w_ref, b_ref, out_ref):
    x = patch_ref[...]                              # (Mp, P_DIM)  bf16
    bias = b_ref[...]                               # (8, 128)     f32

    be = bias[0:1, :EMBED_DIM]
    b1 = bias[1:2, :ENC_HID]
    b2m = bias[2:3, :LATENT]
    b2v = bias[3:4, :LATENT]
    bd1 = bias[4:5, :DEC_HID]
    bd2 = bias[5:6, :OUT_DIM]

    we = w_ref[WE_R0:WE_R1, :EMBED_DIM]             # bf16 weight slices (static)
    w1 = w_ref[W1_R0:W1_R1, :ENC_HID]
    w2m = w_ref[W2M_R0:W2M_R1, :LATENT]
    w2v = w_ref[W2V_R0:W2V_R1, :LATENT]
    wd1 = w_ref[WD1_R0:WD1_R1, :DEC_HID]
    wd2 = w_ref[WD2_R0:WD2_R1, :OUT_DIM]

    # patch embedding (strided conv == per-patch linear); bf16 in, f32 acc
    emb = jnp.dot(x, we, preferred_element_type=jnp.float32) + be

    # encoder MLP -> moments (mean / logvar as two lane-aligned dots)
    h = _gelu(jnp.dot(emb.astype(jnp.bfloat16), w1,
                      preferred_element_type=jnp.float32) + b1)
    hb = h.astype(jnp.bfloat16)
    mean = jnp.dot(hb, w2m, preferred_element_type=jnp.float32) + b2m
    logvar = jnp.clip(jnp.dot(hb, w2v, preferred_element_type=jnp.float32) + b2v,
                      -30.0, 20.0)

    # DiagonalGaussianDistribution: reparameterized sample (f32 elementwise)
    std = jnp.exp(0.5 * logvar)
    z = mean + std * eps_ref[...]

    # decoder MLP -> reconstructed patches
    hd = _gelu(jnp.dot(z.astype(jnp.bfloat16), wd1,
                       preferred_element_type=jnp.float32) + bd1)
    recon = jnp.dot(hd.astype(jnp.bfloat16), wd2,
                    preferred_element_type=jnp.float32) + bd2

    # single lane-dense packed store: [recon | mean | logvar | z | pad]
    pad = jnp.zeros((x.shape[0], PACK_W - USED_W), jnp.float32)
    out_ref[...] = jnp.concatenate([recon, mean, logvar, z, pad], axis=-1)


# ---------------------------------------------------------------------------
# wrapper
# ---------------------------------------------------------------------------
@jax.jit
def vae_forward(sample, eps, w_slab, b_slab):
    """sample: (B, C, H, W) NCHW. Returns dict mirroring the torch forward()."""
    b_sz, c, h, w = sample.shape
    nph, npw = h // PATCH, w // PATCH
    n_tok = nph * npw
    M = b_sz * n_tok

    # patchify NCHW -> (M, PATCH*PATCH*C), fused with the bf16 cast by XLA
    patches = sample.reshape(b_sz, c, nph, PATCH, npw, PATCH)
    patches = patches.transpose(0, 2, 4, 3, 5, 1).reshape(M, P_DIM)
    patches = patches.astype(jnp.bfloat16)

    eps2d = eps.reshape(M, LATENT).astype(jnp.float32)

    # pad token rows to a multiple of 16 (bf16 sublane packing; also avoids
    # dropping trailing rows for general batch sizes)
    Mp = ((M + 15) // 16) * 16
    if Mp != M:
        patches = jnp.pad(patches, ((0, Mp - M), (0, 0)))
        eps2d = jnp.pad(eps2d, ((0, Mp - M), (0, 0)))

    def full(shape):
        return pl.BlockSpec(shape, lambda i: (0, 0))

    packed = pl.pallas_call(
        vae_kernel,
        out_shape=jax.ShapeDtypeStruct((Mp, PACK_W), jnp.float32),
        grid_spec=pltpu.PrefetchScalarGridSpec(
            num_scalar_prefetch=0,
            grid=(1,),                               # whole problem fits in VMEM
            in_specs=[
                full((Mp, P_DIM)),                   # patches (bf16)
                full((Mp, LATENT)),                  # eps     (f32)
                full((W_ROWS, W_LANES)),             # packed weights (bf16)
                full((B_ROWS, 128)),                 # packed biases  (f32)
            ],
            out_specs=full((Mp, PACK_W)),
        ),
        compiler_params=pltpu.CompilerParams(
            dimension_semantics=("arbitrary",),
        ),
    )(patches, eps2d, w_slab, b_slab)

    packed = packed[:M]
    recon = packed[:, REC_OFF:REC_OFF + OUT_DIM]
    mean = packed[:, MEAN_OFF:MEAN_OFF + LATENT]
    logvar = packed[:, LOGVAR_OFF:LOGVAR_OFF + LATENT]
    z = packed[:, Z_OFF:Z_OFF + LATENT]

    # if_mask = False -> mask of zeros, identity ids_restore
    mask = jnp.zeros((b_sz, n_tok), dtype=jnp.float32)
    ids_restore = jnp.tile(jnp.arange(n_tok, dtype=jnp.int32)[None, :], (b_sz, 1))

    return dict(
        recon_sample=recon.reshape(b_sz, n_tok, OUT_DIM),
        posterior=dict(
            mean=mean.reshape(b_sz, n_tok, LATENT),
            logvar=logvar.reshape(b_sz, n_tok, LATENT),
            sample=z.reshape(b_sz, n_tok, LATENT),
        ),
        mask=mask,
        ids_restore=ids_restore,
    )


# ---------------------------------------------------------------------------
# deterministic parameter init + one-time packing (off the hot path)
# ---------------------------------------------------------------------------
def init_params(key):
    def dense(k, fan_in, fan_out):
        scale = 1.0 / jnp.sqrt(fan_in)
        w = jax.random.uniform(k, (fan_in, fan_out), jnp.float32, -scale, scale)
        b = jnp.zeros((fan_out,), jnp.float32)
        return w, b

    keys = jax.random.split(key, 5)
    we, be = dense(keys[0], P_DIM, EMBED_DIM)
    w1, b1 = dense(keys[1], EMBED_DIM, ENC_HID)
    w2, b2 = dense(keys[2], ENC_HID, 2 * LATENT)
    wd1, bd1 = dense(keys[3], LATENT, DEC_HID)
    wd2, bd2 = dense(keys[4], DEC_HID, OUT_DIM)
    return dict(we=we, be=be, w1=w1, b1=b1, w2=w2, b2=b2,
                wd1=wd1, bd1=bd1, wd2=wd2, bd2=bd2)


def pack_params(p):
    """Pack weights into one lane-padded bf16 slab and biases into one f32 slab."""
    def pad_lanes(w):
        return jnp.pad(w, ((0, 0), (0, W_LANES - w.shape[1])))

    w2m = p["w2"][:, :LATENT]
    w2v = p["w2"][:, LATENT:]
    w_slab = jnp.concatenate(
        [pad_lanes(p["we"]), pad_lanes(p["w1"]),
         pad_lanes(w2m), pad_lanes(w2v),
         pad_lanes(p["wd1"]), pad_lanes(p["wd2"])],
        axis=0).astype(jnp.bfloat16)                       # (528, 128) bf16

    def pad_bias(v):
        return jnp.pad(v, (0, 128 - v.shape[0]))[None, :]

    b_slab = jnp.concatenate(
        [pad_bias(p["be"]), pad_bias(p["b1"]),
         pad_bias(p["b2"][:LATENT]), pad_bias(p["b2"][LATENT:]),
         pad_bias(p["bd1"]), pad_bias(p["bd2"]),
         jnp.zeros((2, 128), jnp.float32)],
        axis=0).astype(jnp.float32)                        # (8, 128) f32
    return w_slab, b_slab


if __name__ == "__main__":
    root = jax.random.PRNGKey(0)
    k_x, k_eps, k_p = jax.random.split(root, 3)

    x = jax.random.normal(k_x, (B, C, H, W), jnp.float32)            # NCHW input
    eps = jax.random.normal(k_eps, (B * N_PATCH, LATENT), jnp.float32)
    params = init_params(k_p)
    w_slab, b_slab = pack_params(params)
    w_slab, b_slab = jax.block_until_ready((w_slab, b_slab))

    out = vae_forward(x, eps, w_slab, b_slab)
    jax.block_until_ready(out)

    # light sanity checks on shapes / values
    assert out["recon_sample"].shape == (B, N_PATCH, OUT_DIM)
    assert out["posterior"]["mean"].shape == (B, N_PATCH, LATENT)
    assert out["posterior"]["logvar"].shape == (B, N_PATCH, LATENT)
    assert out["posterior"]["sample"].shape == (B, N_PATCH, LATENT)
    assert out["mask"].shape == (B, N_PATCH)
    assert out["ids_restore"].shape == (B, N_PATCH)
    assert bool(jnp.all(jnp.isfinite(out["recon_sample"])))

    print("KERNEL_OK")
</pallas_src>

<mosaic_0001>
module attributes {stable_mosaic.version = 11 : i64} {
  func.func @vae_kernel(%arg0: i32, %arg1: memref<32x64xbf16, #tpu.memory_space<vmem>>, %arg2: memref<32x16xf32, #tpu.memory_space<vmem>>, %arg3: memref<528x128xbf16, #tpu.memory_space<vmem>>, %arg4: memref<8x128xf32, #tpu.memory_space<vmem>>, %arg5: memref<32x128xf32, #tpu.memory_space<vmem>>) attributes {dimension_semantics = [#tpu.dimension_semantics<arbitrary>], iteration_bounds = array<i64: 1>, scalar_prefetch = 0 : i64, scratch_operands = 0 : i64, tpu.core_type = #tpu.core_type<tc>, window_params = [{pipeline_mode = #tpu.pipeline_mode<synchronous>, transform_indices = @transform_0, window_bounds = array<i64: 32, 64>}, {pipeline_mode = #tpu.pipeline_mode<synchronous>, transform_indices = @transform_1, window_bounds = array<i64: 32, 16>}, {pipeline_mode = #tpu.pipeline_mode<synchronous>, transform_indices = @transform_2, window_bounds = array<i64: 528, 128>}, {pipeline_mode = #tpu.pipeline_mode<synchronous>, transform_indices = @transform_3, window_bounds = array<i64: 8, 128>}, {pipeline_mode = #tpu.pipeline_mode<synchronous>, transform_indices = @transform_4, window_bounds = array<i64: 32, 128>}]} {
    %c0 = arith.constant 0 : index
    %c0_0 = arith.constant 0 : index
    %0 = vector.load %arg1[%c0, %c0_0] : memref<32x64xbf16, #tpu.memory_space<vmem>>, vector<32x64xbf16>
    %c0_1 = arith.constant 0 : index
    %c0_2 = arith.constant 0 : index
    %1 = vector.load %arg4[%c0_1, %c0_2] : memref<8x128xf32, #tpu.memory_space<vmem>>, vector<8x128xf32>
    %2 = vector.extract_strided_slice %1 {offsets = [0, 0], sizes = [1, 64], strides = [1, 1]} : vector<8x128xf32> to vector<1x64xf32>
    %3 = vector.extract_strided_slice %1 {offsets = [1, 0], sizes = [1, 128], strides = [1, 1]} : vector<8x128xf32> to vector<1x128xf32>
    %4 = vector.extract_strided_slice %1 {offsets = [2, 0], sizes = [1, 16], strides = [1, 1]} : vector<8x128xf32> to vector<1x16xf32>
    %5 = vector.extract_strided_slice %1 {offsets = [3, 0], sizes = [1, 16], strides = [1, 1]} : vector<8x128xf32> to vector<1x16xf32>
    %6 = vector.extract_strided_slice %1 {offsets = [4, 0], sizes = [1, 128], strides = [1, 1]} : vector<8x128xf32> to vector<1x128xf32>
    %7 = vector.extract_strided_slice %1 {offsets = [5, 0], sizes = [1, 64], strides = [1, 1]} : vector<8x128xf32> to vector<1x64xf32>
    %c0_3 = arith.constant 0 : index
    %c0_4 = arith.constant 0 : index
    %8 = vector.load %arg3[%c0_3, %c0_4] : memref<528x128xbf16, #tpu.memory_space<vmem>>, vector<64x64xbf16>
    %c64 = arith.constant 64 : index
    %c0_5 = arith.constant 0 : index
    %9 = vector.load %arg3[%c64, %c0_5] : memref<528x128xbf16, #tpu.memory_space<vmem>>, vector<64x128xbf16>
    %c128 = arith.constant 128 : index
    %c0_6 = arith.constant 0 : index
    %10 = vector.load %arg3[%c128, %c0_6] : memref<528x128xbf16, #tpu.memory_space<vmem>>, vector<128x16xbf16>
    %c256 = arith.constant 256 : index
    %c0_7 = arith.constant 0 : index
    %11 = vector.load %arg3[%c256, %c0_7] : memref<528x128xbf16, #tpu.memory_space<vmem>>, vector<128x16xbf16>
    %c384 = arith.constant 384 : index
    %c0_8 = arith.constant 0 : index
    %12 = vector.load %arg3[%c384, %c0_8] : memref<528x128xbf16, #tpu.memory_space<vmem>>, vector<16x128xbf16>
    %c400 = arith.constant 400 : index
    %c0_9 = arith.constant 0 : index
    %13 = vector.load %arg3[%c400, %c0_9] : memref<528x128xbf16, #tpu.memory_space<vmem>>, vector<128x64xbf16>
    %cst = arith.constant dense<0.000000e+00> : vector<32x64xf32>
    %14 = tpu.matmul %0, %8, %cst {dimension_numbers = #tpu.dot_dimension_numbers<[1], [0], [0], [1], [0, 0, 1, 1], [], []>} : vector<32x64xbf16>, vector<64x64xbf16>, vector<32x64xf32> -> vector<32x64xf32>
    %15 = vector.broadcast %2 : vector<1x64xf32> to vector<32x64xf32>
    %16 = arith.addf %14, %15 : vector<32x64xf32>
    %17 = arith.truncf %16 : vector<32x64xf32> to vector<32x64xbf16>
    %cst_10 = arith.constant dense<0.000000e+00> : vector<32x128xf32>
    %18 = tpu.matmul %17, %9, %cst_10 {dimension_numbers = #tpu.dot_dimension_numbers<[1], [0], [0], [1], [0, 0, 1, 1], [], []>} : vector<32x64xbf16>, vector<64x128xbf16>, vector<32x128xf32> -> vector<32x128xf32>
    %19 = vector.broadcast %3 : vector<1x128xf32> to vector<32x128xf32>
    %20 = arith.addf %18, %19 : vector<32x128xf32>
    %cst_11 = arith.constant 5.000000e-01 : f32
    %21 = vector.broadcast %cst_11 : f32 to vector<32x128xf32>
    %22 = arith.mulf %21, %20 : vector<32x128xf32>
    %cst_12 = arith.constant 4.471500e-02 : f32
    %23 = vector.broadcast %cst_12 : f32 to vector<32x128xf32>
    %24 = arith.mulf %23, %20 : vector<32x128xf32>
    %25 = arith.mulf %24, %20 : vector<32x128xf32>
    %26 = arith.mulf %25, %20 : vector<32x128xf32>
    %27 = arith.addf %20, %26 : vector<32x128xf32>
    %cst_13 = arith.constant 0.797884583 : f32
    %28 = vector.broadcast %cst_13 : f32 to vector<32x128xf32>
    %29 = arith.mulf %28, %27 : vector<32x128xf32>
    %30 = math.tanh %29 : vector<32x128xf32>
    %cst_14 = arith.constant 1.000000e+00 : f32
    %31 = vector.broadcast %cst_14 : f32 to vector<32x128xf32>
    %32 = arith.addf %31, %30 : vector<32x128xf32>
    %33 = arith.mulf %22, %32 : vector<32x128xf32>
    %34 = arith.truncf %33 : vector<32x128xf32> to vector<32x128xbf16>
    %cst_15 = arith.constant dense<0.000000e+00> : vector<32x16xf32>
    %35 = tpu.matmul %34, %10, %cst_15 {dimension_numbers = #tpu.dot_dimension_numbers<[1], [0], [0], [1], [0, 0, 1, 1], [], []>} : vector<32x128xbf16>, vector<128x16xbf16>, vector<32x16xf32> -> vector<32x16xf32>
    %36 = vector.broadcast %4 : vector<1x16xf32> to vector<32x16xf32>
    %37 = arith.addf %35, %36 : vector<32x16xf32>
    %cst_16 = arith.constant dense<0.000000e+00> : vector<32x16xf32>
    %38 = tpu.matmul %34, %11, %cst_16 {dimension_numbers = #tpu.dot_dimension_numbers<[1], [0], [0], [1], [0, 0, 1, 1], [], []>} : vector<32x128xbf16>, vector<128x16xbf16>, vector<32x16xf32> -> vector<32x16xf32>
    %39 = vector.broadcast %5 : vector<1x16xf32> to vector<32x16xf32>
    %40 = arith.addf %38, %39 : vector<32x16xf32>
    %cst_17 = arith.constant -3.000000e+01 : f32
    %cst_18 = arith.constant 2.000000e+01 : f32
    %41 = vector.broadcast %cst_17 : f32 to vector<32x16xf32>
    %42 = arith.maximumf %41, %40 : vector<32x16xf32>
    %43 = vector.broadcast %cst_18 : f32 to vector<32x16xf32>
    %44 = arith.minimumf %43, %42 : vector<32x16xf32>
    %cst_19 = arith.constant 5.000000e-01 : f32
    %45 = vector.broadcast %cst_19 : f32 to vector<32x16xf32>
    %46 = arith.mulf %45, %44 : vector<32x16xf32>
    %47 = math.exp %46 : vector<32x16xf32>
    %c0_20 = arith.constant 0 : index
    %c0_21 = arith.constant 0 : index
    %48 = vector.load %arg2[%c0_20, %c0_21] : memref<32x16xf32, #tpu.memory_space<vmem>>, vector<32x16xf32>
    %49 = arith.mulf %47, %48 : vector<32x16xf32>
    %50 = arith.addf %37, %49 : vector<32x16xf32>
    %51 = arith.truncf %50 : vector<32x16xf32> to vector<32x16xbf16>
    %cst_22 = arith.constant dense<0.000000e+00> : vector<32x128xf32>
    %52 = tpu.matmul %51, %12, %cst_22 {dimension_numbers = #tpu.dot_dimension_numbers<[1], [0], [0], [1], [0, 0, 1, 1], [], []>} : vector<32x16xbf16>, vector<16x128xbf16>, vector<32x128xf32> -> vector<32x128xf32>
    %53 = vector.broadcast %6 : vector<1x128xf32> to vector<32x128xf32>
    %54 = arith.addf %52, %53 : vector<32x128xf32>
    %cst_23 = arith.constant 5.000000e-01 : f32
    %55 = vector.broadcast %cst_23 : f32 to vector<32x128xf32>
    %56 = arith.mulf %55, %54 : vector<32x128xf32>
    %cst_24 = arith.constant 4.471500e-02 : f32
    %57 = vector.broadcast %cst_24 : f32 to vector<32x128xf32>
    %58 = arith.mulf %57, %54 : vector<32x128xf32>
    %59 = arith.mulf %58, %54 : vector<32x128xf32>
    %60 = arith.mulf %59, %54 : vector<32x128xf32>
    %61 = arith.addf %54, %60 : vector<32x128xf32>
    %cst_25 = arith.constant 0.797884583 : f32
    %62 = vector.broadcast %cst_25 : f32 to vector<32x128xf32>
    %63 = arith.mulf %62, %61 : vector<32x128xf32>
    %64 = math.tanh %63 : vector<32x128xf32>
    %cst_26 = arith.constant 1.000000e+00 : f32
    %65 = vector.broadcast %cst_26 : f32 to vector<32x128xf32>
    %66 = arith.addf %65, %64 : vector<32x128xf32>
    %67 = arith.mulf %56, %66 : vector<32x128xf32>
    %68 = arith.truncf %67 : vector<32x128xf32> to vector<32x128xbf16>
    %cst_27 = arith.constant dense<0.000000e+00> : vector<32x64xf32>
    %69 = tpu.matmul %68, %13, %cst_27 {dimension_numbers = #tpu.dot_dimension_numbers<[1], [0], [0], [1], [0, 0, 1, 1], [], []>} : vector<32x128xbf16>, vector<128x64xbf16>, vector<32x64xf32> -> vector<32x64xf32>
    %70 = vector.broadcast %7 : vector<1x64xf32> to vector<32x64xf32>
    %71 = arith.addf %69, %70 : vector<32x64xf32>
    %cst_28 = arith.constant 0.000000e+00 : f32
    %72 = vector.broadcast %cst_28 : f32 to vector<32x16xf32>
    %73 = tpu.concatenate %71, %37, %44, %50, %72 in 1 : vector<32x64xf32>, vector<32x16xf32>, vector<32x16xf32>, vector<32x16xf32>, vector<32x16xf32> -> vector<32x128xf32>
    %c0_29 = arith.constant 0 : index
    %c0_30 = arith.constant 0 : index
    %74 = vector.load %arg5[%c0_29, %c0_30] : memref<32x128xf32, #tpu.memory_space<vmem>>, vector<32x128xf32>
    tpu.vector_store %arg5[%c0_29, %c0_30], %73 {strides = array<i32>} : memref<32x128xf32, #tpu.memory_space<vmem>>, vector<32x128xf32>,
    return
  }
  func.func @transform_0(%arg0: i32) -> (i32, i32) {
    %c0_i32 = arith.constant 0 : i32
    %c0_i32_0 = arith.constant 0 : i32
    %c0_i32_1 = arith.constant 0 : i32
    return %c0_i32, %c0_i32_0 : i32, i32
  }
  func.func @transform_1(%arg0: i32) -> (i32, i32) {
    %c0_i32 = arith.constant 0 : i32
    %c0_i32_0 = arith.constant 0 : i32
    %c0_i32_1 = arith.constant 0 : i32
    return %c0_i32, %c0_i32_0 : i32, i32
  }
  func.func @transform_2(%arg0: i32) -> (i32, i32) {
    %c0_i32 = arith.constant 0 : i32
    %c0_i32_0 = arith.constant 0 : i32
    %c0_i32_1 = arith.constant 0 : i32
    return %c0_i32, %c0_i32_0 : i32, i32
  }
  func.func @transform_3(%arg0: i32) -> (i32, i32) {
    %c0_i32 = arith.constant 0 : i32
    %c0_i32_0 = arith.constant 0 : i32
    %c0_i32_1 = arith.constant 0 : i32
    return %c0_i32, %c0_i32_0 : i32, i32
  }
  func.func @transform_4(%arg0: i32) -> (i32, i32) {
    %c0_i32 = arith.constant 0 : i32
    %c0_i32_0 = arith.constant 0 : i32
    %c0_i32_1 = arith.constant 0 : i32
    return %c0_i32, %c0_i32_0 : i32, i32
  }
}

</mosaic_0001>

<llo_original>
// kernel: vae_forward.1
$region0: #{vae_forward.1}
  #allocation0 [shape = 'u32[]', space=smem, size = 0x4, offset = 0x4, fixed_abs, tag = 'smem constant byte address 0x4 - core index']
  #allocation1 [shape = 'u32[144,128]{1,0:T(1,128)}', space=vmem, size = 0x12000, scoped, tag = 'internal scratch']
  %s0 = inlined_call_operand.vmem [shape: bf16[32,64], index: 0, kind: input, shape index: {}]
  %s1 = inlined_call_operand.vmem [shape: f32[32,16], index: 1, kind: input, shape index: {}]
  %s2 = inlined_call_operand.vmem [shape: bf16[528,128], index: 2, kind: input, shape index: {}]
  %s3 = inlined_call_operand.vmem [shape: f32[8,128], index: 3, kind: input, shape index: {}]
  %s4 = inlined_call_operand.vmem [shape: f32[32,128], index: 4, kind: output, shape index: {}]
  %s5 = sld [smem:[#allocation0]]
  $region26: #{vae_forward.1} parent=0
    _
  %s7 = ssub.s32 1, %s5
  %s8 = scalar_select 0, %s7, %s5
  // Predicated region
  $region2: #{vae_forward.1} parent=0 // pred_check
    _
  $region3: #{vae_forward.1} parent=0 // pred_check_branch
    %10 = sbr.rel (0) target = $region5
  $region4: #{vae_forward.1} parent=0 // pred_region
    _
  $region5: #{vae_forward.1} parent=0 // pred_fallthru
    _
  // Predicated region
  $region6: #{vae_forward.1} parent=0 // pred_check
    _
  $region7: #{vae_forward.1} parent=0 // pred_check_branch
    %12 = sbr.rel (0) target = $region9
  $region8: #{vae_forward.1} parent=0 // pred_region
    _
  $region9: #{vae_forward.1} parent=0 // pred_fallthru
    _
  // Predicated region
  $region10: #{vae_forward.1} parent=0 // pred_check
    _
  $region11: #{vae_forward.1} parent=0 // pred_check_branch
    %14 = sbr.rel (0) target = $region13
  $region12: #{vae_forward.1} parent=0 // pred_region
    _
  $region13: #{vae_forward.1} parent=0 // pred_fallthru
    _
  // Predicated region
  $region14: #{vae_forward.1} parent=0 // pred_check
    _
  $region15: #{vae_forward.1} parent=0 // pred_check_branch
    %16 = sbr.rel (0) target = $region17
  $region16: #{vae_forward.1} parent=0 // pred_region
    _
  $region17: #{vae_forward.1} parent=0 // pred_fallthru
    _
  %v18 = vld [vmem:[%s0] sm:$0xf]
  %v19 = vld [vmem:[%s0 + $0x4] sm:$0xf]
  %v20 = vld [vmem:[%s0 + $0x8] sm:$0xf]
  %v21 = vld [vmem:[%s0 + $0xc] sm:$0xf]
  %v22 = vld [vmem:[%s3] sm:$0xff]
  %v23 = vld [vmem:[%s2] sm:$0xf]
  %v24 = vld [vmem:[%s2 + $0x4] sm:$0xf]
  %v25 = vld [vmem:[%s2 + $0x8] sm:$0xf]
  %v26 = vld [vmem:[%s2 + $0xc] sm:$0xf]
  %v27 = vld [vmem:[%s2 + $0x10] sm:$0xf]
  %v28 = vld [vmem:[%s2 + $0x14] sm:$0xf]
  %v29 = vld [vmem:[%s2 + $0x18] sm:$0xf]
  %v30 = vld [vmem:[%s2 + $0x1c] sm:$0xf]
  %v31 = vld [vmem:[%s2 + $0x20] sm:$0xf]
  %v32 = vld [vmem:[%s2 + $0x24] sm:$0xf]
  %v33 = vld [vmem:[%s2 + $0x28] sm:$0xf]
  %v34 = vld [vmem:[%s2 + $0x2c] sm:$0xf]
  %v35 = vld [vmem:[%s2 + $0x30] sm:$0xf]
  %v36 = vld [vmem:[%s2 + $0x34] sm:$0xf]
  %v37 = vld [vmem:[%s2 + $0x38] sm:$0xf]
  %v38 = vld [vmem:[%s2 + $0x3c] sm:$0xf]
  %v39 = vld [vmem:[%s2 + $0x40] sm:$0xf]
  %v40 = vld [vmem:[%s2 + $0x44] sm:$0xf]
  %v41 = vld [vmem:[%s2 + $0x48] sm:$0xf]
  %v42 = vld [vmem:[%s2 + $0x4c] sm:$0xf]
  %v43 = vld [vmem:[%s2 + $0x50] sm:$0xf]
  %v44 = vld [vmem:[%s2 + $0x54] sm:$0xf]
  %v45 = vld [vmem:[%s2 + $0x58] sm:$0xf]
  %v46 = vld [vmem:[%s2 + $0x5c] sm:$0xf]
  %v47 = vld [vmem:[%s2 + $0x60] sm:$0xf]
  %v48 = vld [vmem:[%s2 + $0x64] sm:$0xf]
  %v49 = vld [vmem:[%s2 + $0x68] sm:$0xf]
  %v50 = vld [vmem:[%s2 + $0x6c] sm:$0xf]
  %v51 = vld [vmem:[%s2 + $0x70] sm:$0xf]
  %v52 = vld [vmem:[%s2 + $0x74] sm:$0xf]
  %v53 = vld [vmem:[%s2 + $0x78] sm:$0xf]
  %v54 = vld [vmem:[%s2 + $0x7c] sm:$0xf]
  %v55 = vld [vmem:[%s2 + $0x80] sm:$0xf]
  %v56 = vld [vmem:[%s2 + $0x84] sm:$0xf]
  %v57 = vld [vmem:[%s2 + $0x88] sm:$0xf]
  %v58 = vld [vmem:[%s2 + $0x8c] sm:$0xf]
  %v59 = vld [vmem:[%s2 + $0x90] sm:$0xf]
  %v60 = vld [vmem:[%s2 + $0x94] sm:$0xf]
  %v61 = vld [vmem:[%s2 + $0x98] sm:$0xf]
  %v62 = vld [vmem:[%s2 + $0x9c] sm:$0xf]
  %v63 = vld [vmem:[%s2 + $0xa0] sm:$0xf]
  %v64 = vld [vmem:[%s2 + $0xa4] sm:$0xf]
  %v65 = vld [vmem:[%s2 + $0xa8] sm:$0xf]
  %v66 = vld [vmem:[%s2 + $0xac] sm:$0xf]
  %v67 = vld [vmem:[%s2 + $0xb0] sm:$0xf]
  %v68 = vld [vmem:[%s2 + $0xb4] sm:$0xf]
  %v69 = vld [vmem:[%s2 + $0xb8] sm:$0xf]
  %v70 = vld [vmem:[%s2 + $0xbc] sm:$0xf]
  %v71 = vld [vmem:[%s2 + $0xc0] sm:$0xf]
  %v72 = vld [vmem:[%s2 + $0xc4] sm:$0xf]
  %v73 = vld [vmem:[%s2 + $0xc8] sm:$0xf]
  %v74 = vld [vmem:[%s2 + $0xcc] sm:$0xf]
  %v75 = vld [vmem:[%s2 + $0xd0] sm:$0xf]
  %v76 = vld [vmem:[%s2 + $0xd4] sm:$0xf]
  %v77 = vld [vmem:[%s2 + $0xd8] sm:$0xf]
  %v78 = vld [vmem:[%s2 + $0xdc] sm:$0xf]
  %v79 = vld [vmem:[%s2 + $0xe0] sm:$0xf]
  %v80 = vld [vmem:[%s2 + $0xe4] sm:$0xf]
  %v81 = vld [vmem:[%s2 + $0xe8] sm:$0xf]
  %v82 = vld [vmem:[%s2 + $0xec] sm:$0xf]
  %v83 = vld [vmem:[%s2 + $0xf0] sm:$0xf]
  %v84 = vld [vmem:[%s2 + $0xf4] sm:$0xf]
  %v85 = vld [vmem:[%s2 + $0xf8] sm:$0xf]
  %v86 = vld [vmem:[%s2 + $0xfc] sm:$0xf]
  %v87 = vld [vmem:[%s2 + $0x100] sm:$0xf]
  %v88 = vld [vmem:[%s2 + $0x104] sm:$0xf]
  %v89 = vlaneseq
  %v90 = vshrl.u32 %v89, 7
  %v91 = vsub.s32 0, %v90
  %v92 = vrot.slane %v22, %v91
  %v97 = vunpack.c.l.b16 %v18
  %v98 = vunpack.c.l.b16 %v19
  %v99 = vunpack.c.l.b16 %v20
  %v100 = vunpack.c.l.b16 %v21
  %v101 = vpack.c.b16 %v98, %v97
  %v102 = vpack.c.b16 %v100, %v99
  %v111 = vunpack.c.l.b16 %v23
  %v112 = vunpack.c.l.b16 %v24
  %v113 = vunpack.c.l.b16 %v25
  %v114 = vunpack.c.l.b16 %v26
  %v115 = vunpack.c.l.b16 %v27
  %v116 = vunpack.c.l.b16 %v28
  %v117 = vunpack.c.l.b16 %v29
  %v118 = vunpack.c.l.b16 %v30
  %v119 = vpack.c.b16 %v112, %v111
  %v120 = vpack.c.b16 %v114, %v113
  %v121 = vpack.c.b16 %v116, %v115
  %v122 = vpack.c.b16 %v118, %v117
  %vm127 = vcmask 523264
  %v129 = vsel %vm127, %v101, 0
  %v132 = vsel %vm127, %v102, 0
  %134 = vmatprep.subr.bf16.mxu0 0
  %135 = vmatpush1.bf16.msra.mxu0 0
  %136 = vmatprep.subr.bf16.mxu0 0
  %137 = vmatpush1.bf16.msra.mxu0 0
  %138 = vmatprep.subr.bf16.mxu0 0
  %139 = vmatpush1.bf16.msra.mxu0 0
  %140 = vmatprep.subr.bf16.mxu0 0
  %141 = vmatpush1.bf16.msra.mxu0 0
  %142 = vmatprep.subr.bf16.mxu0 0
  %143 = vmatpush1.bf16.msra.mxu0 %v122
  %144 = vmatprep.subr.bf16.mxu0 0
  %145 = vmatpush1.bf16.msra.mxu0 %v121
  %146 = vmatprep.subr.bf16.mxu0 0
  %147 = vmatpush1.bf16.msra.mxu0 %v120
  %148 = vmatprep.subr.bf16.mxu0 0
  %149 = vmatpush1.bf16.msra.mxu0 %v119
  %150 = vmatprep.subr.bf16.mxu0 0
  %151 = vmatpush2.bf16.msra.mxu0 0
  %152 = vmatprep.subr.bf16.mxu0 0
  %153 = vmatpush2.bf16.msra.mxu0 0
  %154 = vmatprep.subr.bf16.mxu0 0
  %155 = vmatpush2.bf16.msra.mxu0 0
  %156 = vmatprep.subr.bf16.mxu0 0
  %157 = vmatpush2.bf16.msra.mxu0 0
  %158 = vmatprep.subr.bf16.mxu0 0
  %159 = vmatpush2.bf16.msra.mxu0 0
  %160 = vmatprep.subr.bf16.mxu0 0
  %161 = vmatpush2.bf16.msra.mxu0 0
  %162 = vmatprep.subr.bf16.mxu0 0
  %163 = vmatpush2.bf16.msra.mxu0 0
  %164 = vmatprep.subr.bf16.mxu0 0
  %165 = vmatpush2.bf16.msra.mxu0 0
  %166 = vmatprep.mubr.bf16.mxu0 0
  %167 = vmatmul.mubr.bf16.gmra.mxu0 %v129
  %v168 = vpop.f32.mrf.mxu0
  %v169 = vadd.f32 %v92, %v168
  %v170 = vpop.f32.mrf.mxu0
  %v171 = vpop.f32.mrf.mxu0
  %v172 = vadd.f32 %v92, %v171
  %v173 = vpop.f32.mrf.mxu0
  %174 = vmatprep.mubr.bf16.mxu0 0
  %175 = vmatmul.mubr.bf16.gmra.mxu0 %v132
  %v176 = vpop.f32.mrf.mxu0
  %v177 = vadd.f32 %v92, %v176
  %v178 = vpop.f32.mrf.mxu0
  %v179 = vpop.f32.mrf.mxu0
  %v180 = vadd.f32 %v92, %v179
  %v181 = vpop.f32.mrf.mxu0
  %182 = vdwg.mxu0
  %v183 = vpack.c.bf16 %v172, %v169
  %v184 = vpack.c.bf16 %v180, %v177
  %v185 = vlaneseq
  %v186 = vshrl.u32 %v185, 7
  %v187 = vsub.s32 1, %v186
  %v188 = vrot.slane %v22, %v187
  %v197 = vunpack.c.l.b16 %v31
  %v198 = vunpack.c.l.b16 %v32
  %v199 = vunpack.c.l.b16 %v33
  %v200 = vunpack.c.l.b16 %v34
  %v201 = vunpack.c.l.b16 %v35
  %v202 = vunpack.c.l.b16 %v36
  %v203 = vunpack.c.l.b16 %v37
  %v204 = vunpack.c.l.b16 %v38
  %v205 = vpack.c.b16 %v198, %v197
  %v206 = vpack.c.b16 %v200, %v199
  %v207 = vpack.c.b16 %v202, %v201
  %v208 = vpack.c.b16 %v204, %v203
  %v214 = vsel %vm127, %v183, 0
  %v217 = vsel %vm127, %v184, 0
  %219 = vmatprep.subr.bf16.mxu0 0
  %220 = vmatpush1.bf16.msra.mxu0 0
  %221 = vmatprep.subr.bf16.mxu0 0
  %222 = vmatpush1.bf16.msra.mxu0 0
  %223 = vmatprep.subr.bf16.mxu0 0
  %224 = vmatpush1.bf16.msra.mxu0 0
  %225 = vmatprep.subr.bf16.mxu0 0
  %226 = vmatpush1.bf16.msra.mxu0 0
  %227 = vmatprep.subr.bf16.mxu0 0
  %228 = vmatpush1.bf16.msra.mxu0 %v208
  %229 = vmatprep.subr.bf16.mxu0 0
  %230 = vmatpush1.bf16.msra.mxu0 %v207
  %231 = vmatprep.subr.bf16.mxu0 0
  %232 = vmatpush1.bf16.msra.mxu0 %v206
  %233 = vmatprep.subr.bf16.mxu0 0
  %234 = vmatpush1.bf16.msra.mxu0 %v205
  %235 = vmatprep.subr.bf16.mxu0 0
  %236 = vmatpush2.bf16.msra.mxu0 0
  %237 = vmatprep.subr.bf16.mxu0 0
  %238 = vmatpush2.bf16.msra.mxu0 0
  %239 = vmatprep.subr.bf16.mxu0 0
  %240 = vmatpush2.bf16.msra.mxu0 0
  %241 = vmatprep.subr.bf16.mxu0 0
  %242 = vmatpush2.bf16.msra.mxu0 0
  %243 = vmatprep.subr.bf16.mxu0 0
  %244 = vmatpush2.bf16.msra.mxu0 0
  %245 = vmatprep.subr.bf16.mxu0 0
  %246 = vmatpush2.bf16.msra.mxu0 0
  %247 = vmatprep.subr.bf16.mxu0 0
  %248 = vmatpush2.bf16.msra.mxu0 0
  %249 = vmatprep.subr.bf16.mxu0 0
  %250 = vmatpush2.bf16.msra.mxu0 0
  %251 = vmatprep.mubr.bf16.mxu0 0
  %252 = vmatmul.mubr.bf16.gmra.mxu0 %v214
  %v253 = vpop.f32.mrf.mxu0
  %v254 = vadd.f32 %v188, %v253
  %v255 = vpop.f32.mrf.mxu0
  %v256 = vpop.f32.mrf.mxu0
  %v257 = vadd.f32 %v188, %v256
  %v258 = vpop.f32.mrf.mxu0
  %259 = vmatprep.mubr.bf16.mxu0 0
  %260 = vmatmul.mubr.bf16.gmra.mxu0 %v217
  %v261 = vpop.f32.mrf.mxu0
  %v262 = vadd.f32 %v188, %v261
  %v263 = vpop.f32.mrf.mxu0
  %v264 = vpop.f32.mrf.mxu0
  %v265 = vadd.f32 %v188, %v264
  %v266 = vpop.f32.mrf.mxu0
  %267 = vdwg.mxu0
  %v268 = vmul.f32 %v254, 0.5
  %v269 = vmul.f32 %v257, 0.5
  %v270 = vmul.f32 %v262, 0.5
  %v271 = vmul.f32 %v265, 0.5
  %v272 = vmul.f32 %v254, 0.044715
  %v273 = vmul.f32 %v257, 0.044715
  %v274 = vmul.f32 %v262, 0.044715
  %v275 = vmul.f32 %v265, 0.044715
  %v276 = vmul.f32 %v272, %v254
  %v277 = vmul.f32 %v273, %v257
  %v278 = vmul.f32 %v274, %v262
  %v279 = vmul.f32 %v275, %v265
  %v280 = vmul.f32 %v276, %v254
  %v281 = vmul.f32 %v277, %v257
  %v282 = vmul.f32 %v278, %v262
  %v283 = vmul.f32 %v279, %v265
  %v284 = vadd.f32 %v254, %v280
  %v285 = vadd.f32 %v257, %v281
  %v286 = vadd.f32 %v262, %v282
  %v287 = vadd.f32 %v265, %v283
  %v288 = vmul.f32 %v284, 0.7978846
  %v289 = vmul.f32 %v285, 0.7978846
  %v290 = vmul.f32 %v286, 0.7978846
  %v291 = vmul.f32 %v287, 0.7978846
  %v292 = vtanh.pop %v288
  %v293 = vtanh.pop %v289
  %v294 = vtanh.pop %v290
  %v295 = vtanh.pop %v291
  %v296 = vadd.f32 %v292, 1.0
  %v297 = vadd.f32 %v293, 1.0
  %v298 = vadd.f32 %v294, 1.0
  %v299 = vadd.f32 %v295, 1.0
  %v300 = vmul.f32 %v268, %v296
  %v301 = vmul.f32 %v269, %v297
  %v302 = vmul.f32 %v270, %v298
  %v303 = vmul.f32 %v271, %v299
  %v304 = vpack.c.bf16 %v301, %v300
  %v305 = vpack.c.bf16 %v303, %v302
  %v306 = vlaneseq
  %v307 = vshrl.u32 %v306, 7
  %v308 = vsub.s32 2, %v307
  %v309 = vrot.slane %v22, %v308
  %v326 = vunpack.c.l.b16 %v39
  %v327 = vunpack.c.l.b16 %v40
  %v328 = vunpack.c.l.b16 %v41
  %v329 = vunpack.c.l.b16 %v42
  %v330 = vunpack.c.l.b16 %v43
  %v331 = vunpack.c.l.b16 %v44
  %v332 = vunpack.c.l.b16 %v45
  %v333 = vunpack.c.l.b16 %v46
  %v334 = vunpack.c.l.b16 %v47
  %v335 = vunpack.c.l.b16 %v48
  %v336 = vunpack.c.l.b16 %v49
  %v337 = vunpack.c.l.b16 %v50
  %v338 = vunpack.c.l.b16 %v51
  %v339 = vunpack.c.l.b16 %v52
  %v340 = vunpack.c.l.b16 %v53
  %v341 = vunpack.c.l.b16 %v54
  %v342 = vpack.c.b16 %v327, %v326
  %v343 = vpack.c.b16 %v329, %v328
  %v344 = vpack.c.b16 %v331, %v330
  %v345 = vpack.c.b16 %v333, %v332
  %v346 = vpack.c.b16 %v335, %v334
  %v347 = vpack.c.b16 %v337, %v336
  %v348 = vpack.c.b16 %v339, %v338
  %v349 = vpack.c.b16 %v341, %v340
  %358 = vmatprep.subr.bf16.mxu0 0
  %359 = vmatpush1.bf16.msra.mxu0 %v349
  %360 = vmatprep.subr.bf16.mxu0 0
  %361 = vmatpush1.bf16.msra.mxu0 %v348
  %362 = vmatprep.subr.bf16.mxu0 0
  %363 = vmatpush1.bf16.msra.mxu0 %v347
  %364 = vmatprep.subr.bf16.mxu0 0
  %365 = vmatpush1.bf16.msra.mxu0 %v346
  %366 = vmatprep.subr.bf16.mxu0 0
  %367 = vmatpush1.bf16.msra.mxu0 %v345
  %368 = vmatprep.subr.bf16.mxu0 0
  %369 = vmatpush1.bf16.msra.mxu0 %v344
  %370 = vmatprep.subr.bf16.mxu0 0
  %371 = vmatpush1.bf16.msra.mxu0 %v343
  %372 = vmatprep.subr.bf16.mxu0 0
  %373 = vmatpush1.bf16.msra.mxu0 %v342
  %374 = vmatprep.subr.bf16.mxu0 0
  %375 = vmatpush2.bf16.msra.mxu0 0
  %376 = vmatprep.subr.bf16.mxu0 0
  %377 = vmatpush2.bf16.msra.mxu0 0
  %378 = vmatprep.subr.bf16.mxu0 0
  %379 = vmatpush2.bf16.msra.mxu0 0
  %380 = vmatprep.subr.bf16.mxu0 0
  %381 = vmatpush2.bf16.msra.mxu0 0
  %382 = vmatprep.subr.bf16.mxu0 0
  %383 = vmatpush2.bf16.msra.mxu0 0
  %384 = vmatprep.subr.bf16.mxu0 0
  %385 = vmatpush2.bf16.msra.mxu0 0
  %386 = vmatprep.subr.bf16.mxu0 0
  %387 = vmatpush2.bf16.msra.mxu0 0
  %388 = vmatprep.subr.bf16.mxu0 0
  %389 = vmatpush2.bf16.msra.mxu0 0
  %390 = vmatprep.mubr.bf16.mxu0 0
  %391 = vmatmul.mubr.bf16.gmra.mxu0 %v304
  %v392 = vpop.f32.mrf.mxu0
  %v393 = vadd.f32 %v309, %v392
  %v394 = vpop.f32.mrf.mxu0
  %v395 = vpop.f32.mrf.mxu0
  %v396 = vadd.f32 %v309, %v395
  %v397 = vpop.f32.mrf.mxu0
  %398 = vmatprep.mubr.bf16.mxu0 0
  %399 = vmatmul.mubr.bf16.gmra.mxu0 %v305
  %v400 = vpop.f32.mrf.mxu0
  %v401 = vadd.f32 %v309, %v400
  %v402 = vpop.f32.mrf.mxu0
  %v403 = vpop.f32.mrf.mxu0
  %v404 = vadd.f32 %v309, %v403
  %v405 = vpop.f32.mrf.mxu0
  %406 = vdwg.mxu0
  %v407 = vlaneseq
  %v408 = vshrl.u32 %v407, 7
  %v409 = vsub.s32 3, %v408
  %v410 = vrot.slane %v22, %v409
  %v427 = vunpack.c.l.b16 %v55
  %v428 = vunpack.c.l.b16 %v56
  %v429 = vunpack.c.l.b16 %v57
  %v430 = vunpack.c.l.b16 %v58
  %v431 = vunpack.c.l.b16 %v59
  %v432 = vunpack.c.l.b16 %v60
  %v433 = vunpack.c.l.b16 %v61
  %v434 = vunpack.c.l.b16 %v62
  %v435 = vunpack.c.l.b16 %v63
  %v436 = vunpack.c.l.b16 %v64
  %v437 = vunpack.c.l.b16 %v65
  %v438 = vunpack.c.l.b16 %v66
  %v439 = vunpack.c.l.b16 %v67
  %v440 = vunpack.c.l.b16 %v68
  %v441 = vunpack.c.l.b16 %v69
  %v442 = vunpack.c.l.b16 %v70
  %v443 = vpack.c.b16 %v428, %v427
  %v444 = vpack.c.b16 %v430, %v429
  %v445 = vpack.c.b16 %v432, %v431
  %v446 = vpack.c.b16 %v434, %v433
  %v447 = vpack.c.b16 %v436, %v435
  %v448 = vpack.c.b16 %v438, %v437
  %v449 = vpack.c.b16 %v440, %v439
  %v450 = vpack.c.b16 %v442, %v441
  %459 = vmatprep.subr.bf16.mxu0 0
  %460 = vmatpush1.bf16.msra.mxu0 %v450
  %461 = vmatprep.subr.bf16.mxu0 0
  %462 = vmatpush1.bf16.msra.mxu0 %v449
  %463 = vmatprep.subr.bf16.mxu0 0
  %464 = vmatpush1.bf16.msra.mxu0 %v448
  %465 = vmatprep.subr.bf16.mxu0 0
  %466 = vmatpush1.bf16.msra.mxu0 %v447
  %467 = vmatprep.subr.bf16.mxu0 0
  %468 = vmatpush1.bf16.msra.mxu0 %v446
  %469 = vmatprep.subr.bf16.mxu0 0
  %470 = vmatpush1.bf16.msra.mxu0 %v445
  %471 = vmatprep.subr.bf16.mxu0 0
  %472 = vmatpush1.bf16.msra.mxu0 %v444
  %473 = vmatprep.subr.bf16.mxu0 0
  %474 = vmatpush1.bf16.msra.mxu0 %v443
  %475 = vmatprep.subr.bf16.mxu0 0
  %476 = vmatpush2.bf16.msra.mxu0 0
  %477 = vmatprep.subr.bf16.mxu0 0
  %478 = vmatpush2.bf16.msra.mxu0 0
  %479 = vmatprep.subr.bf16.mxu0 0
  %480 = vmatpush2.bf16.msra.mxu0 0
  %481 = vmatprep.subr.bf16.mxu0 0
  %482 = vmatpush2.bf16.msra.mxu0 0
  %483 = vmatprep.subr.bf16.mxu0 0
  %484 = vmatpush2.bf16.msra.mxu0 0
  %485 = vmatprep.subr.bf16.mxu0 0
  %486 = vmatpush2.bf16.msra.mxu0 0
  %487 = vmatprep.subr.bf16.mxu0 0
  %488 = vmatpush2.bf16.msra.mxu0 0
  %489 = vmatprep.subr.bf16.mxu0 0
  %490 = vmatpush2.bf16.msra.mxu0 0
  %491 = vmatprep.mubr.bf16.mxu0 0
  %492 = vmatmul.mubr.bf16.gmra.mxu0 %v304
  %v493 = vpop.f32.mrf.mxu0
  %v494 = vadd.f32 %v410, %v493
  %v495 = vpop.f32.mrf.mxu0
  %v496 = vpop.f32.mrf.mxu0
  %v497 = vadd.f32 %v410, %v496
  %v498 = vpop.f32.mrf.mxu0
  %499 = vmatprep.mubr.bf16.mxu0 0
  %500 = vmatmul.mubr.bf16.gmra.mxu0 %v305
  %v501 = vpop.f32.mrf.mxu0
  %v502 = vadd.f32 %v410, %v501
  %v503 = vpop.f32.mrf.mxu0
  %v504 = vpop.f32.mrf.mxu0
  %v505 = vadd.f32 %v410, %v504
  %v506 = vpop.f32.mrf.mxu0
  %507 = vdwg.mxu0
  %v508 = vmax.f32 %v494, -30.0
  %v509 = vmax.f32 %v497, -30.0
  %v510 = vmax.f32 %v502, -30.0
  %v511 = vmax.f32 %v505, -30.0
  %v512 = vmin.f32 %v508, 20.0
  %v513 = vmin.f32 %v509, 20.0
  %v514 = vmin.f32 %v510, 20.0
  %v515 = vmin.f32 %v511, 20.0
  %v516 = vmul.f32 %v512, 0.5
  %v517 = vmul.f32 %v513, 0.5
  %v518 = vmul.f32 %v514, 0.5
  %v519 = vmul.f32 %v515, 0.5
  %v520 = vmul.f32 %v516, 1.442695
  %v521 = vpow.pop %v520
  %v522 = vmul.f32 %v517, 1.442695
  %v523 = vpow.pop %v522
  %v524 = vmul.f32 %v518, 1.442695
  %v525 = vpow.pop %v524
  %v526 = vmul.f32 %v519, 1.442695
  %v527 = vpow.pop %v526
  %v528 = vld [vmem:[%s1] sm:$0xff]
  %v529 = vld [vmem:[%s1 + $0x8] sm:$0xff]
  %v530 = vld [vmem:[%s1 + $0x10] sm:$0xff]
  %v531 = vld [vmem:[%s1 + $0x18] sm:$0xff]
  %v532 = vmul.f32 %v521, %v528
  %v533 = vmul.f32 %v523, %v529
  %v534 = vmul.f32 %v525, %v530
  %v535 = vmul.f32 %v527, %v531
  %v536 = vadd.f32 %v393, %v532
  %v537 = vadd.f32 %v396, %v533
  %v538 = vadd.f32 %v401, %v534
  %v539 = vadd.f32 %v404, %v535
  %v540 = vpack.c.bf16 %v537, %v536
  %v541 = vpack.c.bf16 %v539, %v538
  %v542 = vlaneseq
  %v543 = vshrl.u32 %v542, 7
  %v544 = vsub.s32 4, %v543
  %v545 = vrot.slane %v22, %v544
  %v548 = vunpack.c.l.b16 %v71
  %v549 = vunpack.c.l.b16 %v72
  %v550 = vpack.c.b16 %v549, %v548
  %vm552 = vcmask 130048
  %v554 = vsel %vm552, %v540, 0
  %v557 = vsel %vm552, %v541, 0
  %559 = vmatprep.subr.bf16.mxu0 0
  %560 = vmatpush1.bf16.msra.mxu0 0
  %561 = vmatprep.subr.bf16.mxu0 0
  %562 = vmatpush1.bf16.msra.mxu0 0
  %563 = vmatprep.subr.bf16.mxu0 0
  %564 = vmatpush1.bf16.msra.mxu0 0
  %565 = vmatprep.subr.bf16.mxu0 0
  %566 = vmatpush1.bf16.msra.mxu0 0
  %567 = vmatprep.subr.bf16.mxu0 0
  %568 = vmatpush1.bf16.msra.mxu0 0
  %569 = vmatprep.subr.bf16.mxu0 0
  %570 = vmatpush1.bf16.msra.mxu0 0
  %571 = vmatprep.subr.bf16.mxu0 0
  %572 = vmatpush1.bf16.msra.mxu0 0
  %573 = vmatprep.subr.bf16.mxu0 0
  %574 = vmatpush1.bf16.msra.mxu0 %v550
  %575 = vmatprep.subr.bf16.mxu0 0
  %576 = vmatpush2.bf16.msra.mxu0 0
  %577 = vmatprep.subr.bf16.mxu0 0
  %578 = vmatpush2.bf16.msra.mxu0 0
  %579 = vmatprep.subr.bf16.mxu0 0
  %580 = vmatpush2.bf16.msra.mxu0 0
  %581 = vmatprep.subr.bf16.mxu0 0
  %582 = vmatpush2.bf16.msra.mxu0 0
  %583 = vmatprep.subr.bf16.mxu0 0
  %584 = vmatpush2.bf16.msra.mxu0 0
  %585 = vmatprep.subr.bf16.mxu0 0
  %586 = vmatpush2.bf16.msra.mxu0 0
  %587 = vmatprep.subr.bf16.mxu0 0
  %588 = vmatpush2.bf16.msra.mxu0 0
  %589 = vmatprep.subr.bf16.mxu0 0
  %590 = vmatpush2.bf16.msra.mxu0 0
  %591 = vmatprep.mubr.bf16.mxu0 0
  %592 = vmatmul.mubr.bf16.gmra.mxu0 %v554
  %v593 = vpop.f32.mrf.mxu0
  %v594 = vadd.f32 %v545, %v593
  %v595 = vpop.f32.mrf.mxu0
  %v596 = vpop.f32.mrf.mxu0
  %v597 = vadd.f32 %v545, %v596
  %v598 = vpop.f32.mrf.mxu0
  %599 = vmatprep.mubr.bf16.mxu0 0
  %600 = vmatmul.mubr.bf16.gmra.mxu0 %v557
  %v601 = vpop.f32.mrf.mxu0
  %v602 = vadd.f32 %v545, %v601
  %v603 = vpop.f32.mrf.mxu0
  %v604 = vpop.f32.mrf.mxu0
  %v605 = vadd.f32 %v545, %v604
  %v606 = vpop.f32.mrf.mxu0
  %607 = vdwg.mxu0
  %v608 = vmul.f32 %v594, 0.5
  %v609 = vmul.f32 %v597, 0.5
  %v610 = vmul.f32 %v602, 0.5
  %v611 = vmul.f32 %v605, 0.5
  %v612 = vmul.f32 %v594, 0.044715
  %v613 = vmul.f32 %v597, 0.044715
  %v614 = vmul.f32 %v602, 0.044715
  %v615 = vmul.f32 %v605, 0.044715
  %v616 = vmul.f32 %v612, %v594
  %v617 = vmul.f32 %v613, %v597
  %v618 = vmul.f32 %v614, %v602
  %v619 = vmul.f32 %v615, %v605
  %v620 = vmul.f32 %v616, %v594
  %v621 = vmul.f32 %v617, %v597
  %v622 = vmul.f32 %v618, %v602
  %v623 = vmul.f32 %v619, %v605
  %v624 = vadd.f32 %v594, %v620
  %v625 = vadd.f32 %v597, %v621
  %v626 = vadd.f32 %v602, %v622
  %v627 = vadd.f32 %v605, %v623
  %v628 = vmul.f32 %v624, 0.7978846
  %v629 = vmul.f32 %v625, 0.7978846
  %v630 = vmul.f32 %v626, 0.7978846
  %v631 = vmul.f32 %v627, 0.7978846
  %v632 = vtanh.pop %v628
  %v633 = vtanh.pop %v629
  %v634 = vtanh.pop %v630
  %v635 = vtanh.pop %v631
  %v636 = vadd.f32 %v632, 1.0
  %v637 = vadd.f32 %v633, 1.0
  %v638 = vadd.f32 %v634, 1.0
  %v639 = vadd.f32 %v635, 1.0
  %v640 = vmul.f32 %v608, %v636
  %v641 = vmul.f32 %v609, %v637
  %v642 = vmul.f32 %v610, %v638
  %v643 = vmul.f32 %v611, %v639
  %v644 = vpack.c.bf16 %v641, %v640
  %v645 = vpack.c.bf16 %v643, %v642
  %v646 = vlaneseq
  %v647 = vshrl.u32 %v646, 7
  %v648 = vsub.s32 5, %v647
  %v649 = vrot.slane %v22, %v648
  %v666 = vunpack.c.l.b16 %v73
  %v667 = vunpack.c.l.b16 %v74
  %v668 = vunpack.c.l.b16 %v75
  %v669 = vunpack.c.l.b16 %v76
  %v670 = vunpack.c.l.b16 %v77
  %v671 = vunpack.c.l.b16 %v78
  %v672 = vunpack.c.l.b16 %v79
  %v673 = vunpack.c.l.b16 %v80
  %v674 = vunpack.c.l.b16 %v81
  %v675 = vunpack.c.l.b16 %v82
  %v676 = vunpack.c.l.b16 %v83
  %v677 = vunpack.c.l.b16 %v84
  %v678 = vunpack.c.l.b16 %v85
  %v679 = vunpack.c.l.b16 %v86
  %v680 = vunpack.c.l.b16 %v87
  %v681 = vunpack.c.l.b16 %v88
  %v682 = vpack.c.b16 %v667, %v666
  %v683 = vpack.c.b16 %v669, %v668
  %v684 = vpack.c.b16 %v671, %v670
  %v685 = vpack.c.b16 %v673, %v672
  %v686 = vpack.c.b16 %v675, %v674
  %v687 = vpack.c.b16 %v677, %v676
  %v688 = vpack.c.b16 %v679, %v678
  %v689 = vpack.c.b16 %v681, %v680
  %698 = vmatprep.subr.bf16.mxu0 0
  %699 = vmatpush1.bf16.msra.mxu0 %v689
  %700 = vmatprep.subr.bf16.mxu0 0
  %701 = vmatpush1.bf16.msra.mxu0 %v688
  %702 = vmatprep.subr.bf16.mxu0 0
  %703 = vmatpush1.bf16.msra.mxu0 %v687
  %704 = vmatprep.subr.bf16.mxu0 0
  %705 = vmatpush1.bf16.msra.mxu0 %v686
  %706 = vmatprep.subr.bf16.mxu0 0
  %707 = vmatpush1.bf16.msra.mxu0 %v685
  %708 = vmatprep.subr.bf16.mxu0 0
  %709 = vmatpush1.bf16.msra.mxu0 %v684
  %710 = vmatprep.subr.bf16.mxu0 0
  %711 = vmatpush1.bf16.msra.mxu0 %v683
  %712 = vmatprep.subr.bf16.mxu0 0
  %713 = vmatpush1.bf16.msra.mxu0 %v682
  %714 = vmatprep.subr.bf16.mxu0 0
  %715 = vmatpush2.bf16.msra.mxu0 0
  %716 = vmatprep.subr.bf16.mxu0 0
  %717 = vmatpush2.bf16.msra.mxu0 0
  %718 = vmatprep.subr.bf16.mxu0 0
  %719 = vmatpush2.bf16.msra.mxu0 0
  %720 = vmatprep.subr.bf16.mxu0 0
  %721 = vmatpush2.bf16.msra.mxu0 0
  %722 = vmatprep.subr.bf16.mxu0 0
  %723 = vmatpush2.bf16.msra.mxu0 0
  %724 = vmatprep.subr.bf16.mxu0 0
  %725 = vmatpush2.bf16.msra.mxu0 0
  %726 = vmatprep.subr.bf16.mxu0 0
  %727 = vmatpush2.bf16.msra.mxu0 0
  %728 = vmatprep.subr.bf16.mxu0 0
  %729 = vmatpush2.bf16.msra.mxu0 0
  %730 = vmatprep.mubr.bf16.mxu0 0
  %731 = vmatmul.mubr.bf16.gmra.mxu0 %v644
  %v732 = vpop.f32.mrf.mxu0
  %v733 = vadd.f32 %v649, %v732
  %v734 = vpop.f32.mrf.mxu0
  %v735 = vpop.f32.mrf.mxu0
  %v736 = vadd.f32 %v649, %v735
  %v737 = vpop.f32.mrf.mxu0
  %738 = vmatprep.mubr.bf16.mxu0 0
  %739 = vmatmul.mubr.bf16.gmra.mxu0 %v645
  %v740 = vpop.f32.mrf.mxu0
  %v741 = vadd.f32 %v649, %v740
  %v742 = vpop.f32.mrf.mxu0
  %v743 = vpop.f32.mrf.mxu0
  %v744 = vadd.f32 %v649, %v743
  %v745 = vpop.f32.mrf.mxu0
  %746 = vdwg.mxu0
  %751 = vrot.lane.b32.xlu0 %v393, 64
  %v752 = vpop.permute.xlu0 %751
  %753 = vrot.lane.b32.xlu0 %v396, 64
  %v754 = vpop.permute.xlu0 %753
  %755 = vrot.lane.b32.xlu0 %v401, 64
  %v756 = vpop.permute.xlu0 %755
  %757 = vrot.lane.b32.xlu0 %v404, 64
  %v758 = vpop.permute.xlu0 %757
  %767 = vrot.lane.b32.xlu0 %v512, 80
  %v768 = vpop.permute.xlu0 %767
  %769 = vrot.lane.b32.xlu0 %v513, 80
  %v770 = vpop.permute.xlu0 %769
  %771 = vrot.lane.b32.xlu0 %v514, 80
  %v772 = vpop.permute.xlu0 %771
  %773 = vrot.lane.b32.xlu0 %v515, 80
  %v774 = vpop.permute.xlu0 %773
  %783 = vrot.lane.b32.xlu0 %v536, 96
  %v784 = vpop.permute.xlu0 %783
  %785 = vrot.lane.b32.xlu0 %v537, 96
  %v786 = vpop.permute.xlu0 %785
  %787 = vrot.lane.b32.xlu0 %v538, 96
  %v788 = vpop.permute.xlu0 %787
  %789 = vrot.lane.b32.xlu0 %v539, 96
  %v790 = vpop.permute.xlu0 %789
  %v795 = vsel %vm127, %v733, %v752
  %v796 = vsel %vm127, %v736, %v754
  %v797 = vsel %vm127, %v741, %v756
  %v798 = vsel %vm127, %v744, %v758
  %vm799 = vcmask 654336
  %v800 = vsel %vm799, %v795, %v768
  %v801 = vsel %vm799, %v796, %v770
  %v802 = vsel %vm799, %v797, %v772
  %v803 = vsel %vm799, %v798, %v774
  %vm804 = vcmask 785408
  %v805 = vsel %vm804, %v800, %v784
  %v806 = vsel %vm804, %v801, %v786
  %v807 = vsel %vm804, %v802, %v788
  %v808 = vsel %vm804, %v803, %v790
  %vm809 = vcmask 916480
  %v810 = vsel %vm809, %v805, 0.0
  %v811 = vsel %vm809, %v806, 0.0
  %v812 = vsel %vm809, %v807, 0.0
  %v813 = vsel %vm809, %v808, 0.0
  %814 = vst [vmem:[%s4] sm:$0xff] %v810
  %815 = vst [vmem:[%s4 + $0x8] sm:$0xff] %v811
  %816 = vst [vmem:[%s4 + $0x10] sm:$0xff] %v812
  %817 = vst [vmem:[%s4 + $0x18] sm:$0xff] %v813
  // Predicated region
  $region18: #{vae_forward.1} parent=0 // pred_check
    _
  $region19: #{vae_forward.1} parent=0 // pred_check_branch
    %819 = sbr.rel (0) target = $region21
  $region20: #{vae_forward.1} parent=0 // pred_region
    _
  $region21: #{vae_forward.1} parent=0 // pred_fallthru
    _
  // Predicated region
  $region22: #{vae_forward.1} parent=0 // pred_check
    _
  $region23: #{vae_forward.1} parent=0 // pred_check_branch
    %821 = sbr.rel (0) target = $region25
  $region24: #{vae_forward.1} parent=0 // pred_region
    _
  $region25: #{vae_forward.1} parent=0 // pred_fallthru
    _

</llo_original>
